<compile_context>
chip_gen: v6e
topology: v6e:2x2x1
jax: 0.10.0
libtpu: 0.0.40
codegen_flags: <defaults>
</compile_context>

<pallas_src>
import functools

import jax
import jax.numpy as jnp
from jax import lax
from jax.experimental import pallas as pl
from jax.experimental.pallas import tpu as pltpu


def vgae_kernel(x2d_ref, adj_ref, w1_ref, w23p_ref, adj_rec_ref, mulv_ref, *, D):
    B, N, _ = adj_ref.shape

    # All math in f32: latency-bound matmuls, so no bf16 casts on the critical path.
    x2d = x2d_ref[...]                                   # (B*N, Fin)
    w1 = w1_ref[...]                                     # (Fin, H)
    w23p = w23p_ref[...]                                 # (H, P)  = [W2 | W3 | 0-pad]

    # gc1 input projection, fused across the whole batch.
    s1 = jnp.dot(x2d, w1, preferred_element_type=jnp.float32)        # (B*N, H)

    # First adjacency propagation per graph, stacked so relu and the gc2|gc3
    # projection each run once over the whole (B*N, H) slab.
    h1 = jnp.concatenate(
        [jnp.dot(adj_ref[b], s1[b * N:(b + 1) * N],
                 preferred_element_type=jnp.float32) for b in range(B)],
        axis=0)
    h1 = jnp.maximum(h1, 0.0)                                         # (B*N, H)

    # gc2|gc3 fused and batch-fused: one (B*N, H) x (H, P) matmul.  P is a
    # 128-multiple (weights zero-padded in the wrapper) so the mulv stores
    # below are lane-dense unmasked vst.
    t = jnp.dot(h1, w23p, preferred_element_type=jnp.float32)         # (B*N, P)

    # Second adjacency propagation + inner-product decoder, per graph
    # (B is tiny and static -> unrolled).
    for b in range(B):
        adj_b = adj_ref[b]                                            # (N, N)
        mulv_b = jnp.dot(adj_b, t[b * N:(b + 1) * N],
                         preferred_element_type=jnp.float32)          # (N, P)

        # z = mu (eval-mode reparameterize); decoder act = identity.
        mu_b = mulv_b[:, :D]                                          # (N, D) f32
        adj_rec_b = lax.dot_general(
            mu_b, mu_b, (((1,), (1,)), ((), ())),                     # contract D
            preferred_element_type=jnp.float32)                       # (N, N)

        mulv_ref[b * N:(b + 1) * N, :] = mulv_b
        adj_rec_ref[b * N:(b + 1) * N, :] = adj_rec_b


def prepare_weights(w2, w3):
    """Fuse gc2/gc3 weights and zero-pad to a lane-dense (128-multiple) width.

    Static parameters -> do this once, outside the per-call jit path.
    """
    _, D = w2.shape
    P = max(128, pl.cdiv(2 * D, 128) * 128)
    w23 = jnp.concatenate([w2, w3], axis=1)               # (H, 2D)
    w23p = jnp.pad(w23, ((0, 0), (0, P - 2 * D)))          # (H, P)
    return w23p


@functools.partial(jax.jit, static_argnames=("output_dim",))
def vgae_forward(x, adj, w1, w23p, output_dim):
    B, N, Fin = x.shape
    D = output_dim
    P = w23p.shape[1]

    x2d = x.reshape(B * N, Fin)       # free reshape; fuses the batch for x @ W1

    adj_rec2d, mulv2d = pl.pallas_call(
        functools.partial(vgae_kernel, D=D),
        out_shape=(
            jax.ShapeDtypeStruct((B * N, N), jnp.float32),   # adj_rec rows
            jax.ShapeDtypeStruct((B * N, P), jnp.float32),   # [mu | logvar | pad]
        ),
        in_specs=[
            pl.BlockSpec(memory_space=pltpu.MemorySpace.VMEM),   # x2d
            pl.BlockSpec(memory_space=pltpu.MemorySpace.VMEM),   # adj
            pl.BlockSpec(memory_space=pltpu.MemorySpace.VMEM),   # w1
            pl.BlockSpec(memory_space=pltpu.MemorySpace.VMEM),   # w23 padded
        ],
        out_specs=(
            pl.BlockSpec(memory_space=pltpu.MemorySpace.VMEM),
            pl.BlockSpec(memory_space=pltpu.MemorySpace.VMEM),
        ),
    )(x2d, adj, w1, w23p)

    adj_rec = adj_rec2d.reshape(B, N, N)
    mu = mulv2d[:, :D].reshape(B, N, D)
    logvar = mulv2d[:, D:2 * D].reshape(B, N, D)
    return adj_rec, mu, logvar


def _glorot(key, shape):
    fan_in, fan_out = shape
    limit = (6.0 / (fan_in + fan_out)) ** 0.5
    return jax.random.uniform(key, shape, jnp.float32, -limit, limit)


def _reference(x, adj, w1, w2, w3):
    h1 = jax.nn.relu(jnp.einsum('bij,bjh->bih', adj, x @ w1))
    mu = jnp.einsum('bij,bjh->bih', adj, h1 @ w2)
    lv = jnp.einsum('bij,bjh->bih', adj, h1 @ w3)
    adj_rec = jnp.einsum('bid,bjd->bij', mu, mu)
    return adj_rec, mu, lv


if __name__ == "__main__":
    B, N = 2, 16
    input_feat_dim, hidden_dim1, output_dim = 32, 16, 8

    key = jax.random.PRNGKey(0)
    kx, ka, k1, k2, k3 = jax.random.split(key, 5)

    x = jax.random.normal(kx, (B, N, input_feat_dim), jnp.float32)

    # symmetric, row-normalized dense adjacency with self loops
    a = jax.random.uniform(ka, (B, N, N), jnp.float32)
    a = (a + jnp.swapaxes(a, 1, 2)) * 0.5
    a = a + jnp.eye(N, dtype=jnp.float32)[None]
    adj = a / jnp.sum(a, axis=-1, keepdims=True)

    w1 = _glorot(k1, (input_feat_dim, hidden_dim1))
    w2 = _glorot(k2, (hidden_dim1, output_dim))
    w3 = _glorot(k3, (hidden_dim1, output_dim))

    # Static-weight preparation hoisted out of the per-call path.
    w23p = prepare_weights(w2, w3)

    adj_rec, mu, logvar = vgae_forward(x, adj, w1, w23p, output_dim)
    jax.block_until_ready((adj_rec, mu, logvar))

    ref_adj_rec, ref_mu, ref_lv = _reference(x, adj, w1, w2, w3)

    assert adj_rec.shape == (B, N, N)
    assert mu.shape == (B, N, output_dim) and logvar.shape == (B, N, output_dim)
    # Full f32 path now -> tight tolerances.
    assert jnp.allclose(mu, ref_mu, atol=1e-3, rtol=1e-3)
    assert jnp.allclose(logvar, ref_lv, atol=1e-3, rtol=1e-3)
    assert jnp.allclose(adj_rec, ref_adj_rec, atol=1e-3, rtol=1e-3)

    print("KERNEL_OK")
</pallas_src>

<mosaic_0001>
module attributes {stable_mosaic.version = 11 : i64} {
  func.func @vgae_kernel(%arg0: memref<32x32xf32, #tpu.memory_space<vmem>>, %arg1: memref<2x16x16xf32, #tpu.memory_space<vmem>>, %arg2: memref<32x16xf32, #tpu.memory_space<vmem>>, %arg3: memref<16x128xf32, #tpu.memory_space<vmem>>, %arg4: memref<32x16xf32, #tpu.memory_space<vmem>>, %arg5: memref<32x128xf32, #tpu.memory_space<vmem>>) attributes {dimension_semantics = [], scalar_prefetch = 0 : i64, scratch_operands = 0 : i64, tpu.core_type = #tpu.core_type<tc>} {
    %c0 = arith.constant 0 : index
    %c0_0 = arith.constant 0 : index
    %0 = vector.load %arg0[%c0, %c0_0] : memref<32x32xf32, #tpu.memory_space<vmem>>, vector<32x32xf32>
    %c0_1 = arith.constant 0 : index
    %c0_2 = arith.constant 0 : index
    %1 = vector.load %arg2[%c0_1, %c0_2] : memref<32x16xf32, #tpu.memory_space<vmem>>, vector<32x16xf32>
    %c0_3 = arith.constant 0 : index
    %c0_4 = arith.constant 0 : index
    %2 = vector.load %arg3[%c0_3, %c0_4] : memref<16x128xf32, #tpu.memory_space<vmem>>, vector<16x128xf32>
    %cst = arith.constant dense<0.000000e+00> : vector<32x16xf32>
    %3 = tpu.matmul %0, %1, %cst {dimension_numbers = #tpu.dot_dimension_numbers<[1], [0], [0], [1], [0, 0, 1, 1], [], []>} : vector<32x32xf32>, vector<32x16xf32>, vector<32x16xf32> -> vector<32x16xf32>
    %c0_5 = arith.constant 0 : index
    %c0_6 = arith.constant 0 : index
    %c0_7 = arith.constant 0 : index
    %4 = vector.load %arg1[%c0_5, %c0_6, %c0_7] : memref<2x16x16xf32, #tpu.memory_space<vmem>>, vector<1x16x16xf32>
    %5 = vector.shape_cast %4 : vector<1x16x16xf32> to vector<16x16xf32>
    %6 = vector.extract_strided_slice %3 {offsets = [0, 0], sizes = [16, 16], strides = [1, 1]} : vector<32x16xf32> to vector<16x16xf32>
    %cst_8 = arith.constant dense<0.000000e+00> : vector<16x16xf32>
    %7 = tpu.matmul %5, %6, %cst_8 {dimension_numbers = #tpu.dot_dimension_numbers<[1], [0], [0], [1], [0, 0, 1, 1], [], []>} : vector<16x16xf32>, vector<16x16xf32>, vector<16x16xf32> -> vector<16x16xf32>
    %c1 = arith.constant 1 : index
    %c0_9 = arith.constant 0 : index
    %c0_10 = arith.constant 0 : index
    %8 = vector.load %arg1[%c1, %c0_9, %c0_10] : memref<2x16x16xf32, #tpu.memory_space<vmem>>, vector<1x16x16xf32>
    %9 = vector.shape_cast %8 : vector<1x16x16xf32> to vector<16x16xf32>
    %10 = vector.extract_strided_slice %3 {offsets = [16, 0], sizes = [16, 16], strides = [1, 1]} : vector<32x16xf32> to vector<16x16xf32>
    %cst_11 = arith.constant dense<0.000000e+00> : vector<16x16xf32>
    %11 = tpu.matmul %9, %10, %cst_11 {dimension_numbers = #tpu.dot_dimension_numbers<[1], [0], [0], [1], [0, 0, 1, 1], [], []>} : vector<16x16xf32>, vector<16x16xf32>, vector<16x16xf32> -> vector<16x16xf32>
    %12 = tpu.concatenate %7, %11 in 0 : vector<16x16xf32>, vector<16x16xf32> -> vector<32x16xf32>
    %cst_12 = arith.constant 0.000000e+00 : f32
    %13 = vector.broadcast %cst_12 : f32 to vector<32x16xf32>
    %14 = arith.maximumf %12, %13 : vector<32x16xf32>
    %cst_13 = arith.constant dense<0.000000e+00> : vector<32x128xf32>
    %15 = tpu.matmul %14, %2, %cst_13 {dimension_numbers = #tpu.dot_dimension_numbers<[1], [0], [0], [1], [0, 0, 1, 1], [], []>} : vector<32x16xf32>, vector<16x128xf32>, vector<32x128xf32> -> vector<32x128xf32>
    %c0_14 = arith.constant 0 : index
    %c0_15 = arith.constant 0 : index
    %c0_16 = arith.constant 0 : index
    %16 = vector.load %arg1[%c0_14, %c0_15, %c0_16] : memref<2x16x16xf32, #tpu.memory_space<vmem>>, vector<1x16x16xf32>
    %17 = vector.shape_cast %16 : vector<1x16x16xf32> to vector<16x16xf32>
    %18 = vector.extract_strided_slice %15 {offsets = [0, 0], sizes = [16, 128], strides = [1, 1]} : vector<32x128xf32> to vector<16x128xf32>
    %cst_17 = arith.constant dense<0.000000e+00> : vector<16x128xf32>
    %19 = tpu.matmul %17, %18, %cst_17 {dimension_numbers = #tpu.dot_dimension_numbers<[1], [0], [0], [1], [0, 0, 1, 1], [], []>} : vector<16x16xf32>, vector<16x128xf32>, vector<16x128xf32> -> vector<16x128xf32>
    %20 = vector.extract_strided_slice %19 {offsets = [0, 0], sizes = [16, 8], strides = [1, 1]} : vector<16x128xf32> to vector<16x8xf32>
    %cst_18 = arith.constant dense<0.000000e+00> : vector<16x16xf32>
    %21 = tpu.matmul %20, %20, %cst_18 {dimension_numbers = #tpu.dot_dimension_numbers<[1], [1], [0], [0], [0, 0, 1, 0], [], []>} : vector<16x8xf32>, vector<16x8xf32>, vector<16x16xf32> -> vector<16x16xf32>
    %c0_19 = arith.constant 0 : index
    %c0_20 = arith.constant 0 : index
    %22 = vector.load %arg5[%c0_19, %c0_20] : memref<32x128xf32, #tpu.memory_space<vmem>>, vector<16x128xf32>
    tpu.vector_store %arg5[%c0_19, %c0_20], %19 {strides = array<i32>} : memref<32x128xf32, #tpu.memory_space<vmem>>, vector<16x128xf32>,
    %c0_21 = arith.constant 0 : index
    %c0_22 = arith.constant 0 : index
    %23 = vector.load %arg4[%c0_21, %c0_22] : memref<32x16xf32, #tpu.memory_space<vmem>>, vector<16x16xf32>
    tpu.vector_store %arg4[%c0_21, %c0_22], %21 {strides = array<i32>} : memref<32x16xf32, #tpu.memory_space<vmem>>, vector<16x16xf32>,
    %c1_23 = arith.constant 1 : index
    %c0_24 = arith.constant 0 : index
    %c0_25 = arith.constant 0 : index
    %24 = vector.load %arg1[%c1_23, %c0_24, %c0_25] : memref<2x16x16xf32, #tpu.memory_space<vmem>>, vector<1x16x16xf32>
    %25 = vector.shape_cast %24 : vector<1x16x16xf32> to vector<16x16xf32>
    %26 = vector.extract_strided_slice %15 {offsets = [16, 0], sizes = [16, 128], strides = [1, 1]} : vector<32x128xf32> to vector<16x128xf32>
    %cst_26 = arith.constant dense<0.000000e+00> : vector<16x128xf32>
    %27 = tpu.matmul %25, %26, %cst_26 {dimension_numbers = #tpu.dot_dimension_numbers<[1], [0], [0], [1], [0, 0, 1, 1], [], []>} : vector<16x16xf32>, vector<16x128xf32>, vector<16x128xf32> -> vector<16x128xf32>
    %28 = vector.extract_strided_slice %27 {offsets = [0, 0], sizes = [16, 8], strides = [1, 1]} : vector<16x128xf32> to vector<16x8xf32>
    %cst_27 = arith.constant dense<0.000000e+00> : vector<16x16xf32>
    %29 = tpu.matmul %28, %28, %cst_27 {dimension_numbers = #tpu.dot_dimension_numbers<[1], [1], [0], [0], [0, 0, 1, 0], [], []>} : vector<16x8xf32>, vector<16x8xf32>, vector<16x16xf32> -> vector<16x16xf32>
    %c16 = arith.constant 16 : index
    %c0_28 = arith.constant 0 : index
    %30 = vector.load %arg5[%c16, %c0_28] : memref<32x128xf32, #tpu.memory_space<vmem>>, vector<16x128xf32>
    tpu.vector_store %arg5[%c16, %c0_28], %27 {strides = array<i32>} : memref<32x128xf32, #tpu.memory_space<vmem>>, vector<16x128xf32>,
    %c16_29 = arith.constant 16 : index
    %c0_30 = arith.constant 0 : index
    %31 = vector.load %arg4[%c16_29, %c0_30] : memref<32x16xf32, #tpu.memory_space<vmem>>, vector<16x16xf32>
    tpu.vector_store %arg4[%c16_29, %c0_30], %29 {strides = array<i32>} : memref<32x16xf32, #tpu.memory_space<vmem>>, vector<16x16xf32>,
    return
  }
}

</mosaic_0001>

<llo_original>
// kernel: vgae_forward.1
$region0: #{vgae_forward.1}
  #allocation0 [shape = 'u32[]', space=smem, size = 0x4, offset = 0x4, fixed_abs, tag = 'smem constant byte address 0x4 - core index']
  #allocation1 [shape = 'u32[144,128]{1,0:T(1,128)}', space=vmem, size = 0x12000, scoped, tag = 'internal scratch']
  %s0 = inlined_call_operand.vmem [shape: f32[32,32], index: 0, kind: input, shape index: {}]
  %s1 = inlined_call_operand.hbm [shape: f32[2,16,16], index: 1, kind: input, shape index: {}]
  %s2 = inlined_call_operand.vmem [shape: f32[32,16], index: 2, kind: input, shape index: {}]
  %s3 = inlined_call_operand.vmem [shape: f32[16,128], index: 3, kind: input, shape index: {}]
  %s4 = inlined_call_operand.hbm [shape: f32[32,16], index: 4, kind: output, shape index: {0}]
  %s5 = inlined_call_operand.vmem [shape: f32[32,128], index: 5, kind: output, shape index: {1}]
  %6 = xla_tuple %s4, %s5
  %s7 = sld [smem:[#allocation0]]
  $region38: #{vgae_forward.1} parent=0
    _
  %s9 = ssub.s32 1, %s7
  %s10 = scalar_select 0, %s9, %s7
  $region1: #{vgae_forward.1} parent=0
    #allocation2 [shape = 'u8[16384]{0}', space=vmem, size = 0x4000, scoped, tag = 'input window, operand 1, single buffered']
    #allocation3 [shape = 's32[1]{0}', space=sflag, size = 0x4, scoped, tag = 'scoped memory for vgae_forward.1']
    #allocation4 [shape = 's32[1]{0}', space=sflag, size = 0x4, scoped, tag = 'scoped memory for vgae_forward.1']
    #allocation5 [shape = 'u8[16384]{0}', space=vmem, size = 0x4000, scoped, tag = 'output window, operand 0, single buffered']
    %11 = vsyncpa [#allocation3], 0
    %12 = vsyncpa [#allocation4], 0
    // Predicated region
    $region2: #{vgae_forward.1} parent=1 // pred_check
      _
    $region3: #{vgae_forward.1} parent=1 // pred_check_branch
      %14 = sbr.rel (0) target = $region5
    $region4: #{vgae_forward.1} parent=1 // pred_region
      _
    $region5: #{vgae_forward.1} parent=1 // pred_fallthru
      _
    // Predicated region
    $region6: #{vgae_forward.1} parent=1 // pred_check
      _
    $region7: #{vgae_forward.1} parent=1 // pred_check_branch
      %16 = sbr.rel (0) target = $region9
    $region8: #{vgae_forward.1} parent=1 // pred_region
      %s18 = ssub.s32 512, 512
      %19 = vsyncadd [#allocation3], %s18
      %s20 = sshll.u32 [#allocation2], 4
      %s21 = int_to_ptr.vmem [resolvable:$true] %s20
      %26 = dma.hbm_to_vmem [thread:$0]  %s1, 512, %s21, [#allocation3], 128, 128, 8
    $region9: #{vgae_forward.1} parent=1 // pred_fallthru
      _
    // Predicated region
    $region10: #{vgae_forward.1} parent=1 // pred_check
      _
    $region11: #{vgae_forward.1} parent=1 // pred_check_branch
      %28 = sbr.rel (0) target = $region13
    $region12: #{vgae_forward.1} parent=1 // pred_region
      _
    $region13: #{vgae_forward.1} parent=1 // pred_fallthru
      _
    // Predicated region
    $region14: #{vgae_forward.1} parent=1 // pred_check
      _
    $region15: #{vgae_forward.1} parent=1 // pred_check_branch
      %30 = sbr.rel (0) target = $region17
    $region16: #{vgae_forward.1} parent=1 // pred_region
      _
    $region17: #{vgae_forward.1} parent=1 // pred_fallthru
      _
    // Predicated region
    $region18: #{vgae_forward.1} parent=1 // pred_check
      _
    $region19: #{vgae_forward.1} parent=1 // pred_check_branch
      %32 = sbr.rel (0) target = $region21
    $region20: #{vgae_forward.1} parent=1 // pred_region
      %33 = dma.done [#allocation3], 512
    $region21: #{vgae_forward.1} parent=1 // pred_fallthru
      _
    %v34 = vld [vmem:[%s0] sm:$0xff]
    %v35 = vld [vmem:[%s0 + $0x8] sm:$0xff]
    %v36 = vld [vmem:[%s0 + $0x10] sm:$0xff]
    %v37 = vld [vmem:[%s0 + $0x18] sm:$0xff]
    %v38 = vld [vmem:[%s2] sm:$0xff]
    %v39 = vld [vmem:[%s2 + $0x8] sm:$0xff]
    %v40 = vld [vmem:[%s2 + $0x10] sm:$0xff]
    %v41 = vld [vmem:[%s2 + $0x18] sm:$0xff]
    %v42 = vld [vmem:[%s3] sm:$0xff]
    %v43 = vld [vmem:[%s3 + $0x8] sm:$0xff]
    %vm44 = vcmask 261120
    %v46 = vsel %vm44, %v34, 0
    %v49 = vsel %vm44, %v35, 0
    %v52 = vsel %vm44, %v36, 0
    %v55 = vsel %vm44, %v37, 0
    %57 = vmatprep.subr.mxu0 0.0
    %58 = vmatpush1.msra.mxu0 0.0
    %59 = vmatprep.subr.mxu0 0.0
    %60 = vmatpush1.msra.mxu0 0.0
    %61 = vmatprep.subr.mxu0 0.0
    %62 = vmatpush1.msra.mxu0 0.0
    %63 = vmatprep.subr.mxu0 0.0
    %64 = vmatpush1.msra.mxu0 0.0
    %65 = vmatprep.subr.mxu0 0.0
    %66 = vmatpush1.msra.mxu0 0.0
    %67 = vmatprep.subr.mxu0 0.0
    %68 = vmatpush1.msra.mxu0 0.0
    %69 = vmatprep.subr.mxu0 0.0
    %70 = vmatpush1.msra.mxu0 0.0
    %71 = vmatprep.subr.mxu0 0.0
    %72 = vmatpush1.msra.mxu0 0.0
    %73 = vmatprep.subr.mxu0 0.0
    %74 = vmatpush1.msra.mxu0 0.0
    %75 = vmatprep.subr.mxu0 0.0
    %76 = vmatpush1.msra.mxu0 0.0
    %77 = vmatprep.subr.mxu0 0.0
    %78 = vmatpush1.msra.mxu0 0.0
    %79 = vmatprep.subr.mxu0 0.0
    %80 = vmatpush1.msra.mxu0 0.0
    %81 = vmatprep.subr.mxu0 0.0
    %82 = vmatpush1.msra.mxu0 %v41
    %83 = vmatprep.subr.mxu0 0.0
    %84 = vmatpush1.msra.mxu0 %v40
    %85 = vmatprep.subr.mxu0 0.0
    %86 = vmatpush1.msra.mxu0 %v39
    %87 = vmatprep.subr.mxu0 0.0
    %88 = vmatpush1.msra.mxu0 %v38
    %89 = vmatprep.subr.mxu0 0.0
    %90 = vmatpush2.msra.mxu0 0.0
    %91 = vmatprep.subr.mxu0 0.0
    %92 = vmatpush2.msra.mxu0 0.0
    %93 = vmatprep.subr.mxu0 0.0
    %94 = vmatpush2.msra.mxu0 0.0
    %95 = vmatprep.subr.mxu0 0.0
    %96 = vmatpush2.msra.mxu0 0.0
    %97 = vmatprep.subr.mxu0 0.0
    %98 = vmatpush2.msra.mxu0 0.0
    %99 = vmatprep.subr.mxu0 0.0
    %100 = vmatpush2.msra.mxu0 0.0
    %101 = vmatprep.subr.mxu0 0.0
    %102 = vmatpush2.msra.mxu0 0.0
    %103 = vmatprep.subr.mxu0 0.0
    %104 = vmatpush2.msra.mxu0 0.0
    %105 = vmatprep.subr.mxu0 0.0
    %106 = vmatpush2.msra.mxu0 0.0
    %107 = vmatprep.subr.mxu0 0.0
    %108 = vmatpush2.msra.mxu0 0.0
    %109 = vmatprep.subr.mxu0 0.0
    %110 = vmatpush2.msra.mxu0 0.0
    %111 = vmatprep.subr.mxu0 0.0
    %112 = vmatpush2.msra.mxu0 0.0
    %113 = vmatprep.subr.mxu0 0.0
    %114 = vmatpush2.msra.mxu0 0.0
    %115 = vmatprep.subr.mxu0 0.0
    %116 = vmatpush2.msra.mxu0 0.0
    %117 = vmatprep.subr.mxu0 0.0
    %118 = vmatpush2.msra.mxu0 0.0
    %119 = vmatprep.subr.mxu0 0.0
    %120 = vmatpush2.msra.mxu0 0.0
    %121 = vmatprep.mubr.f32.mxu0 0.0
    %122 = vmatmul.mubr.f32.gmra.mxu0 %v46
    %v123 = vpop.f32.mrf.mxu0
    %v124 = vadd.f32 0.0, %v123
    %v125 = vpop.f32.mrf.mxu0
    %126 = vmatprep.mubr.f32.mxu0 0.0
    %127 = vmatmul.mubr.f32.gmra.mxu0 %v49
    %v128 = vpop.f32.mrf.mxu0
    %v129 = vadd.f32 0.0, %v128
    %v130 = vpop.f32.mrf.mxu0
    %131 = vmatprep.mubr.f32.mxu0 0.0
    %132 = vmatmul.mubr.f32.gmra.mxu0 %v52
    %v133 = vpop.f32.mrf.mxu0
    %v134 = vadd.f32 0.0, %v133
    %v135 = vpop.f32.mrf.mxu0
    %136 = vmatprep.mubr.f32.mxu0 0.0
    %137 = vmatmul.mubr.f32.gmra.mxu0 %v55
    %v138 = vpop.f32.mrf.mxu0
    %v139 = vadd.f32 0.0, %v138
    %v140 = vpop.f32.mrf.mxu0
    %141 = vdwg.mxu0
    %v142 = vld [vmem:[#allocation2] sm:$0xff]
    %v143 = vld [vmem:[#allocation2 + $0x8] sm:$0xff]
    %vm144 = vcmask 130048
    %v146 = vsel %vm144, %v142, 0
    %v149 = vsel %vm144, %v143, 0
    %151 = vmatprep.subr.mxu0 0.0
    %152 = vmatpush1.msra.mxu0 0.0
    %153 = vmatprep.subr.mxu0 0.0
    %154 = vmatpush1.msra.mxu0 0.0
    %155 = vmatprep.subr.mxu0 0.0
    %156 = vmatpush1.msra.mxu0 0.0
    %157 = vmatprep.subr.mxu0 0.0
    %158 = vmatpush1.msra.mxu0 0.0
    %159 = vmatprep.subr.mxu0 0.0
    %160 = vmatpush1.msra.mxu0 0.0
    %161 = vmatprep.subr.mxu0 0.0
    %162 = vmatpush1.msra.mxu0 0.0
    %163 = vmatprep.subr.mxu0 0.0
    %164 = vmatpush1.msra.mxu0 0.0
    %165 = vmatprep.subr.mxu0 0.0
    %166 = vmatpush1.msra.mxu0 0.0
    %167 = vmatprep.subr.mxu0 0.0
    %168 = vmatpush1.msra.mxu0 0.0
    %169 = vmatprep.subr.mxu0 0.0
    %170 = vmatpush1.msra.mxu0 0.0
    %171 = vmatprep.subr.mxu0 0.0
    %172 = vmatpush1.msra.mxu0 0.0
    %173 = vmatprep.subr.mxu0 0.0
    %174 = vmatpush1.msra.mxu0 0.0
    %175 = vmatprep.subr.mxu0 0.0
    %176 = vmatpush1.msra.mxu0 0.0
    %177 = vmatprep.subr.mxu0 0.0
    %178 = vmatpush1.msra.mxu0 0.0
    %179 = vmatprep.subr.mxu0 0.0
    %180 = vmatpush1.msra.mxu0 %v129
    %181 = vmatprep.subr.mxu0 0.0
    %182 = vmatpush1.msra.mxu0 %v124
    %183 = vmatprep.subr.mxu0 0.0
    %184 = vmatpush2.msra.mxu0 0.0
    %185 = vmatprep.subr.mxu0 0.0
    %186 = vmatpush2.msra.mxu0 0.0
    %187 = vmatprep.subr.mxu0 0.0
    %188 = vmatpush2.msra.mxu0 0.0
    %189 = vmatprep.subr.mxu0 0.0
    %190 = vmatpush2.msra.mxu0 0.0
    %191 = vmatprep.subr.mxu0 0.0
    %192 = vmatpush2.msra.mxu0 0.0
    %193 = vmatprep.subr.mxu0 0.0
    %194 = vmatpush2.msra.mxu0 0.0
    %195 = vmatprep.subr.mxu0 0.0
    %196 = vmatpush2.msra.mxu0 0.0
    %197 = vmatprep.subr.mxu0 0.0
    %198 = vmatpush2.msra.mxu0 0.0
    %199 = vmatprep.subr.mxu0 0.0
    %200 = vmatpush2.msra.mxu0 0.0
    %201 = vmatprep.subr.mxu0 0.0
    %202 = vmatpush2.msra.mxu0 0.0
    %203 = vmatprep.subr.mxu0 0.0
    %204 = vmatpush2.msra.mxu0 0.0
    %205 = vmatprep.subr.mxu0 0.0
    %206 = vmatpush2.msra.mxu0 0.0
    %207 = vmatprep.subr.mxu0 0.0
    %208 = vmatpush2.msra.mxu0 0.0
    %209 = vmatprep.subr.mxu0 0.0
    %210 = vmatpush2.msra.mxu0 0.0
    %211 = vmatprep.subr.mxu0 0.0
    %212 = vmatpush2.msra.mxu0 0.0
    %213 = vmatprep.subr.mxu0 0.0
    %214 = vmatpush2.msra.mxu0 0.0
    %215 = vmatprep.mubr.f32.mxu0 0.0
    %216 = vmatmul.mubr.f32.gmra.mxu0 %v146
    %v217 = vpop.f32.mrf.mxu0
    %v218 = vadd.f32 0.0, %v217
    %v219 = vpop.f32.mrf.mxu0
    %220 = vmatprep.mubr.f32.mxu0 0.0
    %221 = vmatmul.mubr.f32.gmra.mxu0 %v149
    %v222 = vpop.f32.mrf.mxu0
    %v223 = vadd.f32 0.0, %v222
    %v224 = vpop.f32.mrf.mxu0
    %225 = vdwg.mxu0
    %s226 = scalar_lea.vmem [#allocation2], 16
    %v227 = vld [vmem:[%s226] sm:$0xff]
    %v228 = vld [vmem:[%s226 + $0x8] sm:$0xff]
    %v230 = vsel %vm144, %v227, 0
    %v233 = vsel %vm144, %v228, 0
    %235 = vmatprep.subr.mxu0 0.0
    %236 = vmatpush1.msra.mxu0 0.0
    %237 = vmatprep.subr.mxu0 0.0
    %238 = vmatpush1.msra.mxu0 0.0
    %239 = vmatprep.subr.mxu0 0.0
    %240 = vmatpush1.msra.mxu0 0.0
    %241 = vmatprep.subr.mxu0 0.0
    %242 = vmatpush1.msra.mxu0 0.0
    %243 = vmatprep.subr.mxu0 0.0
    %244 = vmatpush1.msra.mxu0 0.0
    %245 = vmatprep.subr.mxu0 0.0
    %246 = vmatpush1.msra.mxu0 0.0
    %247 = vmatprep.subr.mxu0 0.0
    %248 = vmatpush1.msra.mxu0 0.0
    %249 = vmatprep.subr.mxu0 0.0
    %250 = vmatpush1.msra.mxu0 0.0
    %251 = vmatprep.subr.mxu0 0.0
    %252 = vmatpush1.msra.mxu0 0.0
    %253 = vmatprep.subr.mxu0 0.0
    %254 = vmatpush1.msra.mxu0 0.0
    %255 = vmatprep.subr.mxu0 0.0
    %256 = vmatpush1.msra.mxu0 0.0
    %257 = vmatprep.subr.mxu0 0.0
    %258 = vmatpush1.msra.mxu0 0.0
    %259 = vmatprep.subr.mxu0 0.0
    %260 = vmatpush1.msra.mxu0 0.0
    %261 = vmatprep.subr.mxu0 0.0
    %262 = vmatpush1.msra.mxu0 0.0
    %263 = vmatprep.subr.mxu0 0.0
    %264 = vmatpush1.msra.mxu0 %v139
    %265 = vmatprep.subr.mxu0 0.0
    %266 = vmatpush1.msra.mxu0 %v134
    %267 = vmatprep.subr.mxu0 0.0
    %268 = vmatpush2.msra.mxu0 0.0
    %269 = vmatprep.subr.mxu0 0.0
    %270 = vmatpush2.msra.mxu0 0.0
    %271 = vmatprep.subr.mxu0 0.0
    %272 = vmatpush2.msra.mxu0 0.0
    %273 = vmatprep.subr.mxu0 0.0
    %274 = vmatpush2.msra.mxu0 0.0
    %275 = vmatprep.subr.mxu0 0.0
    %276 = vmatpush2.msra.mxu0 0.0
    %277 = vmatprep.subr.mxu0 0.0
    %278 = vmatpush2.msra.mxu0 0.0
    %279 = vmatprep.subr.mxu0 0.0
    %280 = vmatpush2.msra.mxu0 0.0
    %281 = vmatprep.subr.mxu0 0.0
    %282 = vmatpush2.msra.mxu0 0.0
    %283 = vmatprep.subr.mxu0 0.0
    %284 = vmatpush2.msra.mxu0 0.0
    %285 = vmatprep.subr.mxu0 0.0
    %286 = vmatpush2.msra.mxu0 0.0
    %287 = vmatprep.subr.mxu0 0.0
    %288 = vmatpush2.msra.mxu0 0.0
    %289 = vmatprep.subr.mxu0 0.0
    %290 = vmatpush2.msra.mxu0 0.0
    %291 = vmatprep.subr.mxu0 0.0
    %292 = vmatpush2.msra.mxu0 0.0
    %293 = vmatprep.subr.mxu0 0.0
    %294 = vmatpush2.msra.mxu0 0.0
    %295 = vmatprep.subr.mxu0 0.0
    %296 = vmatpush2.msra.mxu0 0.0
    %297 = vmatprep.subr.mxu0 0.0
    %298 = vmatpush2.msra.mxu0 0.0
    %299 = vmatprep.mubr.f32.mxu0 0.0
    %300 = vmatmul.mubr.f32.gmra.mxu0 %v230
    %v301 = vpop.f32.mrf.mxu0
    %v302 = vadd.f32 0.0, %v301
    %v303 = vpop.f32.mrf.mxu0
    %304 = vmatprep.mubr.f32.mxu0 0.0
    %305 = vmatmul.mubr.f32.gmra.mxu0 %v233
    %v306 = vpop.f32.mrf.mxu0
    %v307 = vadd.f32 0.0, %v306
    %v308 = vpop.f32.mrf.mxu0
    %309 = vdwg.mxu0
    %v310 = vmax.f32 %v218, 0.0
    %v311 = vmax.f32 %v223, 0.0
    %v312 = vmax.f32 %v302, 0.0
    %v313 = vmax.f32 %v307, 0.0
    %v315 = vsel %vm144, %v310, 0
    %v318 = vsel %vm144, %v311, 0
    %v321 = vsel %vm144, %v312, 0
    %v324 = vsel %vm144, %v313, 0
    %326 = vmatprep.subr.mxu0 0.0
    %327 = vmatpush1.msra.mxu0 0.0
    %328 = vmatprep.subr.mxu0 0.0
    %329 = vmatpush1.msra.mxu0 0.0
    %330 = vmatprep.subr.mxu0 0.0
    %331 = vmatpush1.msra.mxu0 0.0
    %332 = vmatprep.subr.mxu0 0.0
    %333 = vmatpush1.msra.mxu0 0.0
    %334 = vmatprep.subr.mxu0 0.0
    %335 = vmatpush1.msra.mxu0 0.0
    %336 = vmatprep.subr.mxu0 0.0
    %337 = vmatpush1.msra.mxu0 0.0
    %338 = vmatprep.subr.mxu0 0.0
    %339 = vmatpush1.msra.mxu0 0.0
    %340 = vmatprep.subr.mxu0 0.0
    %341 = vmatpush1.msra.mxu0 0.0
    %342 = vmatprep.subr.mxu0 0.0
    %343 = vmatpush1.msra.mxu0 0.0
    %344 = vmatprep.subr.mxu0 0.0
    %345 = vmatpush1.msra.mxu0 0.0
    %346 = vmatprep.subr.mxu0 0.0
    %347 = vmatpush1.msra.mxu0 0.0
    %348 = vmatprep.subr.mxu0 0.0
    %349 = vmatpush1.msra.mxu0 0.0
    %350 = vmatprep.subr.mxu0 0.0
    %351 = vmatpush1.msra.mxu0 0.0
    %352 = vmatprep.subr.mxu0 0.0
    %353 = vmatpush1.msra.mxu0 0.0
    %354 = vmatprep.subr.mxu0 0.0
    %355 = vmatpush1.msra.mxu0 %v43
    %356 = vmatprep.subr.mxu0 0.0
    %357 = vmatpush1.msra.mxu0 %v42
    %358 = vmatprep.subr.mxu0 0.0
    %359 = vmatpush2.msra.mxu0 0.0
    %360 = vmatprep.subr.mxu0 0.0
    %361 = vmatpush2.msra.mxu0 0.0
    %362 = vmatprep.subr.mxu0 0.0
    %363 = vmatpush2.msra.mxu0 0.0
    %364 = vmatprep.subr.mxu0 0.0
    %365 = vmatpush2.msra.mxu0 0.0
    %366 = vmatprep.subr.mxu0 0.0
    %367 = vmatpush2.msra.mxu0 0.0
    %368 = vmatprep.subr.mxu0 0.0
    %369 = vmatpush2.msra.mxu0 0.0
    %370 = vmatprep.subr.mxu0 0.0
    %371 = vmatpush2.msra.mxu0 0.0
    %372 = vmatprep.subr.mxu0 0.0
    %373 = vmatpush2.msra.mxu0 0.0
    %374 = vmatprep.subr.mxu0 0.0
    %375 = vmatpush2.msra.mxu0 0.0
    %376 = vmatprep.subr.mxu0 0.0
    %377 = vmatpush2.msra.mxu0 0.0
    %378 = vmatprep.subr.mxu0 0.0
    %379 = vmatpush2.msra.mxu0 0.0
    %380 = vmatprep.subr.mxu0 0.0
    %381 = vmatpush2.msra.mxu0 0.0
    %382 = vmatprep.subr.mxu0 0.0
    %383 = vmatpush2.msra.mxu0 0.0
    %384 = vmatprep.subr.mxu0 0.0
    %385 = vmatpush2.msra.mxu0 0.0
    %386 = vmatprep.subr.mxu0 0.0
    %387 = vmatpush2.msra.mxu0 0.0
    %388 = vmatprep.subr.mxu0 0.0
    %389 = vmatpush2.msra.mxu0 0.0
    %390 = vmatprep.mubr.f32.mxu0 0.0
    %391 = vmatmul.mubr.f32.gmra.mxu0 %v315
    %v392 = vpop.f32.mrf.mxu0
    %v393 = vadd.f32 0.0, %v392
    %v394 = vpop.f32.mrf.mxu0
    %395 = vmatprep.mubr.f32.mxu0 0.0
    %396 = vmatmul.mubr.f32.gmra.mxu0 %v318
    %v397 = vpop.f32.mrf.mxu0
    %v398 = vadd.f32 0.0, %v397
    %v399 = vpop.f32.mrf.mxu0
    %400 = vmatprep.mubr.f32.mxu0 0.0
    %401 = vmatmul.mubr.f32.gmra.mxu0 %v321
    %v402 = vpop.f32.mrf.mxu0
    %v403 = vadd.f32 0.0, %v402
    %v404 = vpop.f32.mrf.mxu0
    %405 = vmatprep.mubr.f32.mxu0 0.0
    %406 = vmatmul.mubr.f32.gmra.mxu0 %v324
    %v407 = vpop.f32.mrf.mxu0
    %v408 = vadd.f32 0.0, %v407
    %v409 = vpop.f32.mrf.mxu0
    %410 = vdwg.mxu0
    %411 = vmatprep.subr.mxu0 0.0
    %412 = vmatpush1.msra.mxu0 0.0
    %413 = vmatprep.subr.mxu0 0.0
    %414 = vmatpush1.msra.mxu0 0.0
    %415 = vmatprep.subr.mxu0 0.0
    %416 = vmatpush1.msra.mxu0 0.0
    %417 = vmatprep.subr.mxu0 0.0
    %418 = vmatpush1.msra.mxu0 0.0
    %419 = vmatprep.subr.mxu0 0.0
    %420 = vmatpush1.msra.mxu0 0.0
    %421 = vmatprep.subr.mxu0 0.0
    %422 = vmatpush1.msra.mxu0 0.0
    %423 = vmatprep.subr.mxu0 0.0
    %424 = vmatpush1.msra.mxu0 0.0
    %425 = vmatprep.subr.mxu0 0.0
    %426 = vmatpush1.msra.mxu0 0.0
    %427 = vmatprep.subr.mxu0 0.0
    %428 = vmatpush1.msra.mxu0 0.0
    %429 = vmatprep.subr.mxu0 0.0
    %430 = vmatpush1.msra.mxu0 0.0
    %431 = vmatprep.subr.mxu0 0.0
    %432 = vmatpush1.msra.mxu0 0.0
    %433 = vmatprep.subr.mxu0 0.0
    %434 = vmatpush1.msra.mxu0 0.0
    %435 = vmatprep.subr.mxu0 0.0
    %436 = vmatpush1.msra.mxu0 0.0
    %437 = vmatprep.subr.mxu0 0.0
    %438 = vmatpush1.msra.mxu0 0.0
    %439 = vmatprep.subr.mxu0 0.0
    %440 = vmatpush1.msra.mxu0 %v398
    %441 = vmatprep.subr.mxu0 0.0
    %442 = vmatpush1.msra.mxu0 %v393
    %443 = vmatprep.subr.mxu0 0.0
    %444 = vmatpush2.msra.mxu0 0.0
    %445 = vmatprep.subr.mxu0 0.0
    %446 = vmatpush2.msra.mxu0 0.0
    %447 = vmatprep.subr.mxu0 0.0
    %448 = vmatpush2.msra.mxu0 0.0
    %449 = vmatprep.subr.mxu0 0.0
    %450 = vmatpush2.msra.mxu0 0.0
    %451 = vmatprep.subr.mxu0 0.0
    %452 = vmatpush2.msra.mxu0 0.0
    %453 = vmatprep.subr.mxu0 0.0
    %454 = vmatpush2.msra.mxu0 0.0
    %455 = vmatprep.subr.mxu0 0.0
    %456 = vmatpush2.msra.mxu0 0.0
    %457 = vmatprep.subr.mxu0 0.0
    %458 = vmatpush2.msra.mxu0 0.0
    %459 = vmatprep.subr.mxu0 0.0
    %460 = vmatpush2.msra.mxu0 0.0
    %461 = vmatprep.subr.mxu0 0.0
    %462 = vmatpush2.msra.mxu0 0.0
    %463 = vmatprep.subr.mxu0 0.0
    %464 = vmatpush2.msra.mxu0 0.0
    %465 = vmatprep.subr.mxu0 0.0
    %466 = vmatpush2.msra.mxu0 0.0
    %467 = vmatprep.subr.mxu0 0.0
    %468 = vmatpush2.msra.mxu0 0.0
    %469 = vmatprep.subr.mxu0 0.0
    %470 = vmatpush2.msra.mxu0 0.0
    %471 = vmatprep.subr.mxu0 0.0
    %472 = vmatpush2.msra.mxu0 0.0
    %473 = vmatprep.subr.mxu0 0.0
    %474 = vmatpush2.msra.mxu0 0.0
    %475 = vmatprep.mubr.f32.mxu0 0.0
    %476 = vmatmul.mubr.f32.gmra.mxu0 %v146
    %v477 = vpop.f32.mrf.mxu0
    %v478 = vadd.f32 0.0, %v477
    %v479 = vpop.f32.mrf.mxu0
    %480 = vmatprep.mubr.f32.mxu0 0.0
    %481 = vmatmul.mubr.f32.gmra.mxu0 %v149
    %v482 = vpop.f32.mrf.mxu0
    %v483 = vadd.f32 0.0, %v482
    %v484 = vpop.f32.mrf.mxu0
    %485 = vdwg.mxu0
    %vm486 = vcmask 64512
    %v488 = vsel %vm486, %v478, 0
    %v491 = vsel %vm486, %v483, 0
    %493 = vmatprep.subr.mxu0 0.0
    %494 = vmatpush1.xpose.msra.mxu0 0.0
    %495 = vmatprep.subr.mxu0 0.0
    %496 = vmatpush1.xpose.msra.mxu0 0.0
    %497 = vmatprep.subr.mxu0 0.0
    %498 = vmatpush1.xpose.msra.mxu0 0.0
    %499 = vmatprep.subr.mxu0 0.0
    %500 = vmatpush1.xpose.msra.mxu0 0.0
    %501 = vmatprep.subr.mxu0 0.0
    %502 = vmatpush1.xpose.msra.mxu0 0.0
    %503 = vmatprep.subr.mxu0 0.0
    %504 = vmatpush1.xpose.msra.mxu0 0.0
    %505 = vmatprep.subr.mxu0 0.0
    %506 = vmatpush1.xpose.msra.mxu0 0.0
    %507 = vmatprep.subr.mxu0 0.0
    %508 = vmatpush1.xpose.msra.mxu0 0.0
    %509 = vmatprep.subr.mxu0 0.0
    %510 = vmatpush1.xpose.msra.mxu0 0.0
    %511 = vmatprep.subr.mxu0 0.0
    %512 = vmatpush1.xpose.msra.mxu0 0.0
    %513 = vmatprep.subr.mxu0 0.0
    %514 = vmatpush1.xpose.msra.mxu0 0.0
    %515 = vmatprep.subr.mxu0 0.0
    %516 = vmatpush1.xpose.msra.mxu0 0.0
    %517 = vmatprep.subr.mxu0 0.0
    %518 = vmatpush1.xpose.msra.mxu0 0.0
    %519 = vmatprep.subr.mxu0 0.0
    %520 = vmatpush1.xpose.msra.mxu0 0.0
    %521 = vmatprep.subr.mxu0 0.0
    %522 = vmatpush1.xpose.msra.mxu0 %v491
    %523 = vmatprep.subr.mxu0 0.0
    %524 = vmatpush1.xpose.msra.mxu0 %v488
    %525 = vmatprep.subr.mxu0 0.0
    %526 = vmatpush2.xpose.msra.mxu0 0.0
    %527 = vmatprep.subr.mxu0 0.0
    %528 = vmatpush2.xpose.msra.mxu0 0.0
    %529 = vmatprep.subr.mxu0 0.0
    %530 = vmatpush2.xpose.msra.mxu0 0.0
    %531 = vmatprep.subr.mxu0 0.0
    %532 = vmatpush2.xpose.msra.mxu0 0.0
    %533 = vmatprep.subr.mxu0 0.0
    %534 = vmatpush2.xpose.msra.mxu0 0.0
    %535 = vmatprep.subr.mxu0 0.0
    %536 = vmatpush2.xpose.msra.mxu0 0.0
    %537 = vmatprep.subr.mxu0 0.0
    %538 = vmatpush2.xpose.msra.mxu0 0.0
    %539 = vmatprep.subr.mxu0 0.0
    %540 = vmatpush2.xpose.msra.mxu0 0.0
    %541 = vmatprep.subr.mxu0 0.0
    %542 = vmatpush2.xpose.msra.mxu0 0.0
    %543 = vmatprep.subr.mxu0 0.0
    %544 = vmatpush2.xpose.msra.mxu0 0.0
    %545 = vmatprep.subr.mxu0 0.0
    %546 = vmatpush2.xpose.msra.mxu0 0.0
    %547 = vmatprep.subr.mxu0 0.0
    %548 = vmatpush2.xpose.msra.mxu0 0.0
    %549 = vmatprep.subr.mxu0 0.0
    %550 = vmatpush2.xpose.msra.mxu0 0.0
    %551 = vmatprep.subr.mxu0 0.0
    %552 = vmatpush2.xpose.msra.mxu0 0.0
    %553 = vmatprep.subr.mxu0 0.0
    %554 = vmatpush2.xpose.msra.mxu0 0.0
    %555 = vmatprep.subr.mxu0 0.0
    %556 = vmatpush2.xpose.msra.mxu0 0.0
    %557 = vmatprep.mubr.f32.mxu0 0.0
    %558 = vmatmul.mubr.f32.gmra.mxu0 %v488
    %v559 = vpop.f32.mrf.mxu0
    %v560 = vadd.f32 0.0, %v559
    %v561 = vpop.f32.mrf.mxu0
    %562 = vmatprep.mubr.f32.mxu0 0.0
    %563 = vmatmul.mubr.f32.gmra.mxu0 %v491
    %v564 = vpop.f32.mrf.mxu0
    %v565 = vadd.f32 0.0, %v564
    %v566 = vpop.f32.mrf.mxu0
    %567 = vdwg.mxu0
    %568 = vst [vmem:[%s5] sm:$0xff] %v478
    %569 = vst [vmem:[%s5 + $0x8] sm:$0xff] %v483
    %570 = vst.msk [vmem:[#allocation5] sm:$0xff] %vm144, %v560
    %571 = vst.msk [vmem:[#allocation5 + $0x8] sm:$0xff] %vm144, %v565
    %v572 = vld [vmem:[%s226] sm:$0xff]
    %v573 = vld [vmem:[%s226 + $0x8] sm:$0xff]
    %v575 = vsel %vm144, %v572, 0
    %v578 = vsel %vm144, %v573, 0
    %580 = vmatprep.subr.mxu0 0.0
    %581 = vmatpush1.msra.mxu0 0.0
    %582 = vmatprep.subr.mxu0 0.0
    %583 = vmatpush1.msra.mxu0 0.0
    %584 = vmatprep.subr.mxu0 0.0
    %585 = vmatpush1.msra.mxu0 0.0
    %586 = vmatprep.subr.mxu0 0.0
    %587 = vmatpush1.msra.mxu0 0.0
    %588 = vmatprep.subr.mxu0 0.0
    %589 = vmatpush1.msra.mxu0 0.0
    %590 = vmatprep.subr.mxu0 0.0
    %591 = vmatpush1.msra.mxu0 0.0
    %592 = vmatprep.subr.mxu0 0.0
    %593 = vmatpush1.msra.mxu0 0.0
    %594 = vmatprep.subr.mxu0 0.0
    %595 = vmatpush1.msra.mxu0 0.0
    %596 = vmatprep.subr.mxu0 0.0
    %597 = vmatpush1.msra.mxu0 0.0
    %598 = vmatprep.subr.mxu0 0.0
    %599 = vmatpush1.msra.mxu0 0.0
    %600 = vmatprep.subr.mxu0 0.0
    %601 = vmatpush1.msra.mxu0 0.0
    %602 = vmatprep.subr.mxu0 0.0
    %603 = vmatpush1.msra.mxu0 0.0
    %604 = vmatprep.subr.mxu0 0.0
    %605 = vmatpush1.msra.mxu0 0.0
    %606 = vmatprep.subr.mxu0 0.0
    %607 = vmatpush1.msra.mxu0 0.0
    %608 = vmatprep.subr.mxu0 0.0
    %609 = vmatpush1.msra.mxu0 %v408
    %610 = vmatprep.subr.mxu0 0.0
    %611 = vmatpush1.msra.mxu0 %v403
    %612 = vmatprep.subr.mxu0 0.0
    %613 = vmatpush2.msra.mxu0 0.0
    %614 = vmatprep.subr.mxu0 0.0
    %615 = vmatpush2.msra.mxu0 0.0
    %616 = vmatprep.subr.mxu0 0.0
    %617 = vmatpush2.msra.mxu0 0.0
    %618 = vmatprep.subr.mxu0 0.0
    %619 = vmatpush2.msra.mxu0 0.0
    %620 = vmatprep.subr.mxu0 0.0
    %621 = vmatpush2.msra.mxu0 0.0
    %622 = vmatprep.subr.mxu0 0.0
    %623 = vmatpush2.msra.mxu0 0.0
    %624 = vmatprep.subr.mxu0 0.0
    %625 = vmatpush2.msra.mxu0 0.0
    %626 = vmatprep.subr.mxu0 0.0
    %627 = vmatpush2.msra.mxu0 0.0
    %628 = vmatprep.subr.mxu0 0.0
    %629 = vmatpush2.msra.mxu0 0.0
    %630 = vmatprep.subr.mxu0 0.0
    %631 = vmatpush2.msra.mxu0 0.0
    %632 = vmatprep.subr.mxu0 0.0
    %633 = vmatpush2.msra.mxu0 0.0
    %634 = vmatprep.subr.mxu0 0.0
    %635 = vmatpush2.msra.mxu0 0.0
    %636 = vmatprep.subr.mxu0 0.0
    %637 = vmatpush2.msra.mxu0 0.0
    %638 = vmatprep.subr.mxu0 0.0
    %639 = vmatpush2.msra.mxu0 0.0
    %640 = vmatprep.subr.mxu0 0.0
    %641 = vmatpush2.msra.mxu0 0.0
    %642 = vmatprep.subr.mxu0 0.0
    %643 = vmatpush2.msra.mxu0 0.0
    %644 = vmatprep.mubr.f32.mxu0 0.0
    %645 = vmatmul.mubr.f32.gmra.mxu0 %v575
    %v646 = vpop.f32.mrf.mxu0
    %v647 = vadd.f32 0.0, %v646
    %v648 = vpop.f32.mrf.mxu0
    %649 = vmatprep.mubr.f32.mxu0 0.0
    %650 = vmatmul.mubr.f32.gmra.mxu0 %v578
    %v651 = vpop.f32.mrf.mxu0
    %v652 = vadd.f32 0.0, %v651
    %v653 = vpop.f32.mrf.mxu0
    %654 = vdwg.mxu0
    %v656 = vsel %vm486, %v647, 0
    %v659 = vsel %vm486, %v652, 0
    %661 = vmatprep.subr.mxu0 0.0
    %662 = vmatpush1.xpose.msra.mxu0 0.0
    %663 = vmatprep.subr.mxu0 0.0
    %664 = vmatpush1.xpose.msra.mxu0 0.0
    %665 = vmatprep.subr.mxu0 0.0
    %666 = vmatpush1.xpose.msra.mxu0 0.0
    %667 = vmatprep.subr.mxu0 0.0
    %668 = vmatpush1.xpose.msra.mxu0 0.0
    %669 = vmatprep.subr.mxu0 0.0
    %670 = vmatpush1.xpose.msra.mxu0 0.0
    %671 = vmatprep.subr.mxu0 0.0
    %672 = vmatpush1.xpose.msra.mxu0 0.0
    %673 = vmatprep.subr.mxu0 0.0
    %674 = vmatpush1.xpose.msra.mxu0 0.0
    %675 = vmatprep.subr.mxu0 0.0
    %676 = vmatpush1.xpose.msra.mxu0 0.0
    %677 = vmatprep.subr.mxu0 0.0
    %678 = vmatpush1.xpose.msra.mxu0 0.0
    %679 = vmatprep.subr.mxu0 0.0
    %680 = vmatpush1.xpose.msra.mxu0 0.0
    %681 = vmatprep.subr.mxu0 0.0
    %682 = vmatpush1.xpose.msra.mxu0 0.0
    %683 = vmatprep.subr.mxu0 0.0
    %684 = vmatpush1.xpose.msra.mxu0 0.0
    %685 = vmatprep.subr.mxu0 0.0
    %686 = vmatpush1.xpose.msra.mxu0 0.0
    %687 = vmatprep.subr.mxu0 0.0
    %688 = vmatpush1.xpose.msra.mxu0 0.0
    %689 = vmatprep.subr.mxu0 0.0
    %690 = vmatpush1.xpose.msra.mxu0 %v659
    %691 = vmatprep.subr.mxu0 0.0
    %692 = vmatpush1.xpose.msra.mxu0 %v656
    %693 = vmatprep.subr.mxu0 0.0
    %694 = vmatpush2.xpose.msra.mxu0 0.0
    %695 = vmatprep.subr.mxu0 0.0
    %696 = vmatpush2.xpose.msra.mxu0 0.0
    %697 = vmatprep.subr.mxu0 0.0
    %698 = vmatpush2.xpose.msra.mxu0 0.0
    %699 = vmatprep.subr.mxu0 0.0
    %700 = vmatpush2.xpose.msra.mxu0 0.0
    %701 = vmatprep.subr.mxu0 0.0
    %702 = vmatpush2.xpose.msra.mxu0 0.0
    %703 = vmatprep.subr.mxu0 0.0
    %704 = vmatpush2.xpose.msra.mxu0 0.0
    %705 = vmatprep.subr.mxu0 0.0
    %706 = vmatpush2.xpose.msra.mxu0 0.0
    %707 = vmatprep.subr.mxu0 0.0
    %708 = vmatpush2.xpose.msra.mxu0 0.0
    %709 = vmatprep.subr.mxu0 0.0
    %710 = vmatpush2.xpose.msra.mxu0 0.0
    %711 = vmatprep.subr.mxu0 0.0
    %712 = vmatpush2.xpose.msra.mxu0 0.0
    %713 = vmatprep.subr.mxu0 0.0
    %714 = vmatpush2.xpose.msra.mxu0 0.0
    %715 = vmatprep.subr.mxu0 0.0
    %716 = vmatpush2.xpose.msra.mxu0 0.0
    %717 = vmatprep.subr.mxu0 0.0
    %718 = vmatpush2.xpose.msra.mxu0 0.0
    %719 = vmatprep.subr.mxu0 0.0
    %720 = vmatpush2.xpose.msra.mxu0 0.0
    %721 = vmatprep.subr.mxu0 0.0
    %722 = vmatpush2.xpose.msra.mxu0 0.0
    %723 = vmatprep.subr.mxu0 0.0
    %724 = vmatpush2.xpose.msra.mxu0 0.0
    %725 = vmatprep.mubr.f32.mxu0 0.0
    %726 = vmatmul.mubr.f32.gmra.mxu0 %v656
    %v727 = vpop.f32.mrf.mxu0
    %v728 = vadd.f32 0.0, %v727
    %v729 = vpop.f32.mrf.mxu0
    %730 = vmatprep.mubr.f32.mxu0 0.0
    %731 = vmatmul.mubr.f32.gmra.mxu0 %v659
    %v732 = vpop.f32.mrf.mxu0
    %v733 = vadd.f32 0.0, %v732
    %v734 = vpop.f32.mrf.mxu0
    %735 = vdwg.mxu0
    %736 = vst [vmem:[%s5 + $0x10] sm:$0xff] %v647
    %737 = vst [vmem:[%s5 + $0x18] sm:$0xff] %v652
    %738 = vst.msk [vmem:[#allocation5 + $0x10] sm:$0xff] %vm144, %v728
    %739 = vst.msk [vmem:[#allocation5 + $0x18] sm:$0xff] %vm144, %v733
    // Predicated region
    $region22: #{vgae_forward.1} parent=1 // pred_check
      _
    $region23: #{vgae_forward.1} parent=1 // pred_check_branch
      %741 = sbr.rel (0) target = $region25
    $region24: #{vgae_forward.1} parent=1 // pred_region
      %s743 = ssub.s32 512, 512
      %744 = vsyncadd [#allocation4], %s743
      %s745 = sshll.u32 [#allocation5], 4
      %s746 = int_to_ptr.vmem [resolvable:$true] %s745
      %751 = dma.vmem_to_hbm [thread:$0]  %s746, 512, %s4, [#allocation4], 128, 128, 8
    $region25: #{vgae_forward.1} parent=1 // pred_fallthru
      _
    // Predicated region
    $region26: #{vgae_forward.1} parent=1 // pred_check
      _
    $region27: #{vgae_forward.1} parent=1 // pred_check_branch
      %753 = sbr.rel (0) target = $region29
    $region28: #{vgae_forward.1} parent=1 // pred_region
      _
    $region29: #{vgae_forward.1} parent=1 // pred_fallthru
      _
    // Predicated region
    $region30: #{vgae_forward.1} parent=1 // pred_check
      _
    $region31: #{vgae_forward.1} parent=1 // pred_check_branch
      %755 = sbr.rel (0) target = $region33
    $region32: #{vgae_forward.1} parent=1 // pred_region
      %756 = dma.done [#allocation4], 512
    $region33: #{vgae_forward.1} parent=1 // pred_fallthru
      _
    // Predicated region
    $region34: #{vgae_forward.1} parent=1 // pred_check
      _
    $region35: #{vgae_forward.1} parent=1 // pred_check_branch
      %758 = sbr.rel (0) target = $region37
    $region36: #{vgae_forward.1} parent=1 // pred_region
      _
    $region37: #{vgae_forward.1} parent=1 // pred_fallthru
      _
    %759 = vsyncpa [#allocation3], 1
    %760 = vsyncpa [#allocation4], 1

</llo_original>
